<compile_context>
chip_gen: v7x
topology: tpu7x:2x2x1
jax: 0.10.0
libtpu: 0.0.40
codegen_flags: <defaults>
</compile_context>

<pallas_src>
import numpy as np
import jax
import jax.numpy as jnp
from jax.experimental import pallas as pl
from jax.experimental.pallas import tpu as pltpu


LANES = 128          # vreg lane width; keep the output last dim lane-dense
SUBLANES = 8         # f32 sublane granularity
MAX_ROW_TILE = 1024  # elementwise/copy kernels hit ~85% HBM BW at 512-1024 rows


def _round_up(x, m):
    return (x + m - 1) // m * m


def _resolve_view_shape(total, shape):
    """Resolve a single -1 the same way torch.Tensor.view does."""
    shape = list(shape)
    neg = [i for i, s in enumerate(shape) if s == -1]
    if len(neg) > 1:
        raise ValueError("only one dimension can be inferred (-1)")
    if neg:
        known = 1
        for s in shape:
            if s != -1:
                known *= int(s)
        if known == 0 or total % known != 0:
            raise ValueError(f"cannot view {total} elements as {tuple(shape)}")
        shape[neg[0]] = total // known
    if int(np.prod(shape)) != total:
        raise ValueError(f"cannot view {total} elements as {tuple(shape)}")
    return tuple(int(s) for s in shape)


def _copy_kernel(x_ref, o_ref):
    o_ref[...] = x_ref[...]


def pallas_reshape(x, shape):
    """Equivalent of x.view(shape): identity copy through a Pallas kernel,
    shape reinterpretation as metadata."""
    total = int(np.prod(x.shape))
    out_shape = _resolve_view_shape(total, shape)

    # Flatten and lay out as a lane-dense [rows, 128] slab (rows multiple of 8).
    flat = x.reshape(-1)
    padded_len = _round_up(max(total, 1), SUBLANES * LANES)
    if padded_len != total:
        flat = jnp.pad(flat, (0, padded_len - total))
    rows = padded_len // LANES
    x2 = flat.reshape(rows, LANES)

    # Big row tiles, cdiv + padding (no divisibility assumptions on input size).
    tm = min(rows, MAX_ROW_TILE)
    grid_m = pl.cdiv(rows, tm)
    rows_p = grid_m * tm
    if rows_p != rows:
        x2 = jnp.pad(x2, ((0, rows_p - rows), (0, 0)))

    out = pl.pallas_call(
        _copy_kernel,
        out_shape=jax.ShapeDtypeStruct((rows_p, LANES), x.dtype),
        grid=(grid_m,),
        in_specs=[pl.BlockSpec((tm, LANES), lambda i: (i, 0))],
        out_specs=pl.BlockSpec((tm, LANES), lambda i: (i, 0)),
        compiler_params=pltpu.CompilerParams(
            dimension_semantics=("parallel",)),  # shard across TCs on v7x
    )(x2)

    return out.reshape(-1)[:total].reshape(out_shape)


class Reshape:
    """Mirror of the PyTorch module: Reshape(*args).forward(x) == x.view(args)."""

    def __init__(self, *args):
        self.shape = args

    def __call__(self, x):
        return pallas_reshape(x, self.shape)


if __name__ == "__main__":
    key = jax.random.PRNGKey(0)
    x = jax.random.normal(key, (2, 4, 16, 16), jnp.float32)  # small test input

    module = Reshape(2, -1)                       # x.view(2, -1) -> (2, 1024)
    fwd = jax.jit(module.__call__)
    y = jax.block_until_ready(fwd(x))

    assert y.shape == (2, 1024), y.shape
    ref = x.reshape(2, -1)
    assert bool(jnp.all(y == ref)), "Pallas reshape does not match jnp.reshape"

    # A second shape to exercise the -1 resolution / padding path.
    y2 = jax.block_until_ready(jax.jit(lambda a: pallas_reshape(a, (8, 16, -1)))(x))
    assert y2.shape == (8, 16, 16)
    assert bool(jnp.all(y2 == x.reshape(8, 16, 16)))

    print("KERNEL_OK")
</pallas_src>

<mosaic_0001>
module attributes {stable_mosaic.version = 11 : i64} {
  func.func @_copy_kernel(%arg0: i32, %arg1: memref<16x128xf32, #tpu.memory_space<vmem>>, %arg2: memref<16x128xf32, #tpu.memory_space<vmem>>) attributes {dimension_semantics = [#tpu.dimension_semantics<parallel>], iteration_bounds = array<i64: 1>, scalar_prefetch = 0 : i64, scratch_operands = 0 : i64, tpu.core_type = #tpu.core_type<tc>, window_params = [{transform_indices = @transform_0, window_bounds = array<i64: 16, 128>}, {transform_indices = @transform_1, window_bounds = array<i64: 16, 128>}]} {
    %c0 = arith.constant 0 : index
    %c0_0 = arith.constant 0 : index
    %0 = vector.load %arg1[%c0, %c0_0] : memref<16x128xf32, #tpu.memory_space<vmem>>, vector<16x128xf32>
    %c0_1 = arith.constant 0 : index
    %c0_2 = arith.constant 0 : index
    %1 = vector.load %arg2[%c0_1, %c0_2] : memref<16x128xf32, #tpu.memory_space<vmem>>, vector<16x128xf32>
    tpu.vector_store %arg2[%c0_1, %c0_2], %0 {strides = array<i32>} : memref<16x128xf32, #tpu.memory_space<vmem>>, vector<16x128xf32>,
    return
  }
  func.func @transform_0(%arg0: i32) -> (i32, i32) {
    %c0_i32 = arith.constant 0 : i32
    %c0_i32_0 = arith.constant 0 : i32
    return %arg0, %c0_i32 : i32, i32
  }
  func.func @transform_1(%arg0: i32) -> (i32, i32) {
    %c0_i32 = arith.constant 0 : i32
    %c0_i32_0 = arith.constant 0 : i32
    return %arg0, %c0_i32 : i32, i32
  }
}

</mosaic_0001>

<llo_original>
// kernel: a_call__.1
$region0: #{a_call__.1}
  #allocation0 [shape = 'u32[]', space=smem, size = 0x4, offset = 0x4, fixed_abs, tag = 'smem constant byte address 0x4 - core index']
  #allocation1 [shape = 'u32[144,128]{1,0:T(1,128)}', space=vmem, size = 0x12000, scoped, tag = 'internal scratch']
  %s0 = inlined_call_operand.vmem [shape: f32[16,128], index: 0, kind: input, shape index: {}]
  %s1 = inlined_call_operand.vmem [shape: f32[16,128], index: 1, kind: output, shape index: {}]
  %s2 = sld [smem:[#allocation0]]
  $region14: #{a_call__.1} parent=0
    _
  %s4 = ssub.s32 1, %s2
  %s5 = scalar_select 0, %s4, %s2
  // Predicated region
  $region2: #{a_call__.1} parent=0 // pred_check
    _
  $region3: #{a_call__.1} parent=0 // pred_check_branch
    %7 = sbr.rel (0) target = $region5
  $region4: #{a_call__.1} parent=0 // pred_region
    _
  $region5: #{a_call__.1} parent=0 // pred_fallthru
    _
  %v8 = vld [vmem:[%s0] sm:$0xff]
  %v9 = vld [vmem:[%s0 + $0x8] sm:$0xff]
  %10 = vst [vmem:[%s1] sm:$0xff] %v8
  %11 = vst [vmem:[%s1 + $0x8] sm:$0xff] %v9
  // Predicated region
  $region6: #{a_call__.1} parent=0 // pred_check
    _
  $region7: #{a_call__.1} parent=0 // pred_check_branch
    %13 = sbr.rel (0) target = $region9
  $region8: #{a_call__.1} parent=0 // pred_region
    _
  $region9: #{a_call__.1} parent=0 // pred_fallthru
    _
  // Predicated region
  $region10: #{a_call__.1} parent=0 // pred_check
    _
  $region11: #{a_call__.1} parent=0 // pred_check_branch
    %15 = sbr.rel (0) target = $region13
  $region12: #{a_call__.1} parent=0 // pred_region
    _
  $region13: #{a_call__.1} parent=0 // pred_fallthru
    _

</llo_original>
